<compile_context>
chip_gen: v7x
topology: tpu7x:2x2x1
jax: 0.10.0
libtpu: 0.0.40
codegen_flags: <defaults>
</compile_context>

<pallas_src>
import math

import jax
import jax.numpy as jnp
from jax import lax
from jax.experimental import pallas as pl
from jax.experimental.pallas import tpu as pltpu


_NEG_INF = -1e30  # large finite negative: no NaN rows even if a tile were fully masked
_VMEM_LIMIT = 48 * 1024 * 1024  # < 64 MiB physical on v7x, > v5e's 16 MiB scoped default


def _sublane_align(dtype):
    """Sublane alignment for a dtype: 8 for 4-byte, 16 for bf16, 32 for int8/fp8."""
    return max(8, 32 // jnp.dtype(dtype).itemsize)


def _fit_tile(dim, target, align):
    """Largest tile <= target that divides dim and is a multiple of align
    (falls back to the full dim, which always satisfies the layout rules;
    note: for huge awkward dims that fallback may be VMEM-expensive)."""
    if dim <= target:
        return dim
    t = (target // align) * align
    while t >= align:
        if dim % t == 0:
            return t
        t -= align
    return dim


# ---------------------------------------------------------------------------
# Tiled GEMM + bias (QKV projection and output projection)
# ---------------------------------------------------------------------------
def _linear_kernel(x_ref, w_ref, b_ref, o_ref, acc_ref):
    k = pl.program_id(2)

    @pl.when(k == 0)
    def _init():
        acc_ref[...] = jnp.zeros_like(acc_ref)

    acc_ref[...] += jnp.dot(x_ref[...], w_ref[...],
                            preferred_element_type=jnp.float32)

    @pl.when(k == pl.num_programs(2) - 1)
    def _finalize():
        o_ref[...] = (acc_ref[...] + b_ref[...].astype(jnp.float32)).astype(o_ref.dtype)


def _linear(x2, w, b, *, tm=512, tn=512, tk=1024):
    M, K = x2.shape
    Kw, N = w.shape
    assert K == Kw
    tm = _fit_tile(M, tm, _sublane_align(x2.dtype))
    tn = _fit_tile(N, tn, 128)
    tk = _fit_tile(K, tk, 128)   # K=768 (GPT-2) fits one tile: no k-axis revisit
    b2 = b.reshape(1, N)
    return pl.pallas_call(
        _linear_kernel,
        out_shape=jax.ShapeDtypeStruct((M, N), x2.dtype),
        grid_spec=pltpu.PrefetchScalarGridSpec(
            num_scalar_prefetch=0,
            grid=(M // tm, N // tn, K // tk),
            in_specs=[
                pl.BlockSpec((tm, tk), lambda i, j, k: (i, k)),
                pl.BlockSpec((tk, tn), lambda i, j, k: (k, j)),
                pl.BlockSpec((1, tn), lambda i, j, k: (0, j)),
            ],
            out_specs=pl.BlockSpec((tm, tn), lambda i, j, k: (i, j)),
            scratch_shapes=[pltpu.VMEM((tm, tn), jnp.float32)],
        ),
        compiler_params=pltpu.CompilerParams(
            dimension_semantics=("parallel", "parallel", "arbitrary"),
            vmem_limit_bytes=_VMEM_LIMIT),
    )(x2, w, b2)


# ---------------------------------------------------------------------------
# Flash attention over the fused QKV buffer: all heads per grid step,
# online softmax, causal tile skipping, lane-dense (tq, D) output.
# ---------------------------------------------------------------------------
def _flash_attn_kernel(q_ref, k_ref, v_ref, o_ref, m_sc, l_sc, acc_sc):
    # q_ref: (tq, H, hd); k_ref/v_ref: (tkv, H, hd); o_ref: (tq, H*hd)
    tq, H, hd = q_ref.shape
    tkv = k_ref.shape[0]

    qi = pl.program_id(1)
    ki = pl.program_id(2)

    @pl.when(ki == 0)
    def _init():
        m_sc[...] = jnp.full_like(m_sc, _NEG_INF)
        l_sc[...] = jnp.zeros_like(l_sc)
        acc_sc[...] = jnp.zeros_like(acc_sc)

    q_start = qi * tq
    k_start = ki * tkv
    q_last = q_start + (tq - 1)
    k_last = k_start + (tkv - 1)

    def _update(masked):
        # Keep MXU-native dtype: no f32 upcast, no scaling (scale folded into w_qkv).
        q = jnp.transpose(q_ref[...], (1, 0, 2))   # (H, tq, hd)
        k = jnp.transpose(k_ref[...], (1, 0, 2))   # (H, tkv, hd)
        v = jnp.transpose(v_ref[...], (1, 0, 2))   # (H, tkv, hd)
        # Batched over heads; K^T absorbed into the contraction (no lane transpose).
        s = jnp.einsum('hqd,hkd->hqk', q, k,
                       preferred_element_type=jnp.float32)          # (H, tq, tkv)
        if masked:  # only the diagonal (straddling) tile pays the iota/select cost
            q_pos = q_start + lax.broadcasted_iota(jnp.int32, (tq, tkv), 0)
            k_pos = k_start + lax.broadcasted_iota(jnp.int32, (tq, tkv), 1)
            s = jnp.where((q_pos >= k_pos)[None, :, :], s, _NEG_INF)
        m_prev = m_sc[...]                                           # (H, tq, 1)
        m_new = jnp.maximum(m_prev, jnp.max(s, axis=-1, keepdims=True))
        alpha = jnp.exp(m_prev - m_new)
        p = jnp.exp(s - m_new)                                       # f32
        l_sc[...] = alpha * l_sc[...] + jnp.sum(p, axis=-1, keepdims=True)
        pv = jnp.einsum('hqk,hkd->hqd', p.astype(v.dtype), v,
                        preferred_element_type=jnp.float32)          # (H, tq, hd)
        acc_sc[...] = alpha * acc_sc[...] + pv
        m_sc[...] = m_new

    # KV tile entirely at/below the causal diagonal: no mask needed.
    @pl.when(k_last <= q_start)
    def _full_tile():
        _update(masked=False)

    # KV tile straddling the diagonal: masked update.
    @pl.when(jnp.logical_and(k_last > q_start, k_start <= q_last))
    def _diag_tile():
        _update(masked=True)

    # KV tiles entirely above the diagonal: no compute at all.

    @pl.when(ki == pl.num_programs(2) - 1)
    def _finalize():
        inv_l = pl.reciprocal(l_sc[...], approx=False)               # (H, tq, 1)
        out = acc_sc[...] * inv_l                                    # (H, tq, hd)
        out = jnp.transpose(out, (1, 0, 2)).reshape(tq, H * hd)      # lane-dense
        o_ref[...] = out.astype(o_ref.dtype)


def _flash_attention(qkv, *, tq_target=256, tkv_target=256):
    """qkv: (B, T, 3, H, hd) fused projection output -> (B, T, H*hd)."""
    B, T, _, H, hd = qkv.shape
    D = H * hd
    align = _sublane_align(qkv.dtype)
    tq = _fit_tile(T, tq_target, align)
    tkv = _fit_tile(T, tkv_target, align)
    nq, nkv = T // tq, T // tkv

    def q_index(b, qi, ki):
        return (b, qi, 0, 0, 0)

    def kv_index(sel):
        def idx(b, qi, ki):
            # Clamp to the last KV tile this query tile needs under causal masking:
            # skipped (fully-masked) grid steps keep the same block index -> no DMA.
            kmax = (qi * tq + (tq - 1)) // tkv
            return (b, jnp.minimum(ki, kmax), sel, 0, 0)
        return idx

    return pl.pallas_call(
        _flash_attn_kernel,
        out_shape=jax.ShapeDtypeStruct((B, T, D), qkv.dtype),
        grid_spec=pltpu.PrefetchScalarGridSpec(
            num_scalar_prefetch=0,
            grid=(B, nq, nkv),
            in_specs=[
                pl.BlockSpec((None, tq, None, H, hd), q_index),     # q slice
                pl.BlockSpec((None, tkv, None, H, hd), kv_index(1)),  # k slice
                pl.BlockSpec((None, tkv, None, H, hd), kv_index(2)),  # v slice
            ],
            out_specs=pl.BlockSpec((None, tq, D), lambda b, qi, ki: (b, qi, 0)),
            scratch_shapes=[
                pltpu.VMEM((H, tq, 1), jnp.float32),    # running max m
                pltpu.VMEM((H, tq, 1), jnp.float32),    # running denominator l
                pltpu.VMEM((H, tq, hd), jnp.float32),   # output accumulator
            ],
        ),
        compiler_params=pltpu.CompilerParams(
            dimension_semantics=("parallel", "parallel", "arbitrary"),
            vmem_limit_bytes=_VMEM_LIMIT),
    )(qkv, qkv, qkv)   # same fused buffer, three index maps (q / k / v columns)


# ---------------------------------------------------------------------------
# Full forward (matches CasualSelfAttention.forward)
# ---------------------------------------------------------------------------
def causal_self_attention(x, w_qkv, b_qkv, w_proj, b_proj, n_head):
    """x: (B, T, D); w_qkv: (D, 3D); b_qkv: (3D,); w_proj: (D, D); b_proj: (D,)."""
    B, T, D = x.shape
    assert D % n_head == 0
    hd = D // n_head
    scale = 1.0 / math.sqrt(hd)

    # Fold 1/sqrt(hd) into the Q columns of the QKV projection (free at runtime;
    # in a real model this would be done once at parameter-prep time).
    col_scale = jnp.concatenate([
        jnp.full((D,), scale, dtype=w_qkv.dtype),
        jnp.ones((2 * D,), dtype=w_qkv.dtype),
    ])
    w_qkv_s = w_qkv * col_scale[None, :]
    b_qkv_s = b_qkv * col_scale

    # QKV projection as a tiled GEMM pass.
    qkv = _linear(x.reshape(B * T, D), w_qkv_s, b_qkv_s)          # (B*T, 3D)

    # Free reshape: columns are laid out (3, H, hd); no transposes anywhere.
    qkv = qkv.reshape(B, T, 3, n_head, hd)

    # Flash attention (all heads per grid step), output already merged-head.
    y = _flash_attention(qkv)                                      # (B, T, D)

    # Output projection.
    out = _linear(y.reshape(B * T, D), w_proj, b_proj)             # (B*T, D)
    return out.reshape(B, T, D)


# ---------------------------------------------------------------------------
# Pure-JAX reference (mirrors the PyTorch module)
# ---------------------------------------------------------------------------
def _reference(x, w_qkv, b_qkv, w_proj, b_proj, n_head):
    B, T, D = x.shape
    hd = D // n_head
    qkv = x @ w_qkv + b_qkv
    q, k, v = jnp.split(qkv, 3, axis=-1)
    q = q.reshape(B, T, n_head, hd).transpose(0, 2, 1, 3)
    k = k.reshape(B, T, n_head, hd).transpose(0, 2, 1, 3)
    v = v.reshape(B, T, n_head, hd).transpose(0, 2, 1, 3)
    s = (q @ jnp.swapaxes(k, -2, -1)) * (1.0 / math.sqrt(hd))
    mask = jnp.tril(jnp.ones((T, T), dtype=bool))
    s = jnp.where(mask[None, None], s, -jnp.inf)
    p = jax.nn.softmax(s, axis=-1)
    y = (p @ v).transpose(0, 2, 1, 3).reshape(B, T, D)
    return y @ w_proj + b_proj


if __name__ == "__main__":
    # config: n_embd=32, n_head=4; small shapes B=2, T=8
    B, T, D, n_head = 2, 8, 32, 4

    key = jax.random.PRNGKey(0)
    k_x, k_wa, k_ba, k_wp, k_bp = jax.random.split(key, 5)

    x = jax.random.normal(k_x, (B, T, D), dtype=jnp.float32)
    # "Linear" parameters stored as (in, out) for the kernels.
    w_qkv = jax.random.normal(k_wa, (D, 3 * D), dtype=jnp.float32) * 0.02
    b_qkv = jax.random.normal(k_ba, (3 * D,), dtype=jnp.float32) * 0.02
    w_proj = jax.random.normal(k_wp, (D, D), dtype=jnp.float32) * 0.02
    b_proj = jax.random.normal(k_bp, (D,), dtype=jnp.float32) * 0.02

    out = causal_self_attention(x, w_qkv, b_qkv, w_proj, b_proj, n_head)
    out = jax.block_until_ready(out)

    ref = _reference(x, w_qkv, b_qkv, w_proj, b_proj, n_head)
    assert out.shape == (B, T, D)
    assert jnp.allclose(out, ref, atol=2e-5, rtol=2e-5), "mismatch vs reference"

    print("KERNEL_OK")
</pallas_src>

<mosaic_0001>
module attributes {stable_mosaic.version = 11 : i64} {
  func.func @_linear_kernel(%arg0: i32, %arg1: i32, %arg2: i32, %arg3: memref<16x32xf32, #tpu.memory_space<vmem>>, %arg4: memref<32x96xf32, #tpu.memory_space<vmem>>, %arg5: memref<1x96xf32, #tpu.memory_space<vmem>>, %arg6: memref<16x96xf32, #tpu.memory_space<vmem>>, %arg7: memref<16x96xf32, #tpu.memory_space<vmem>>) attributes {dimension_semantics = [#tpu.dimension_semantics<parallel>, #tpu.dimension_semantics<parallel>, #tpu.dimension_semantics<arbitrary>], iteration_bounds = array<i64: 1, 1, 1>, scalar_prefetch = 0 : i64, scratch_operands = 1 : i64, tpu.core_type = #tpu.core_type<tc>, window_params = [{transform_indices = @transform_0, window_bounds = array<i64: 16, 32>}, {transform_indices = @transform_1, window_bounds = array<i64: 32, 96>}, {transform_indices = @transform_2, window_bounds = array<i64: 1, 96>}, {transform_indices = @transform_3, window_bounds = array<i64: 16, 96>}]} {
    %c0_i32 = arith.constant 0 : i32
    %0 = arith.cmpi eq, %arg2, %c0_i32 : i32
    %1 = arith.extui %0 : i1 to i32
    %c0_i32_0 = arith.constant 0 : i32
    %2 = arith.cmpi ne, %1, %c0_i32_0 : i32
    scf.if %2 {
      %cst_10 = arith.constant 0.000000e+00 : f32
      %12 = vector.broadcast %cst_10 : f32 to vector<16x96xf32>
      %c0_11 = arith.constant 0 : index
      %c0_12 = arith.constant 0 : index
      %13 = vector.load %arg7[%c0_11, %c0_12] : memref<16x96xf32, #tpu.memory_space<vmem>>, vector<16x96xf32>
      tpu.vector_store %arg7[%c0_11, %c0_12], %12 {strides = array<i32>} : memref<16x96xf32, #tpu.memory_space<vmem>>, vector<16x96xf32>,
    } else {
    }
    %c0 = arith.constant 0 : index
    %c0_1 = arith.constant 0 : index
    %3 = vector.load %arg7[%c0, %c0_1] : memref<16x96xf32, #tpu.memory_space<vmem>>, vector<16x96xf32>
    %c0_2 = arith.constant 0 : index
    %c0_3 = arith.constant 0 : index
    %4 = vector.load %arg3[%c0_2, %c0_3] : memref<16x32xf32, #tpu.memory_space<vmem>>, vector<16x32xf32>
    %c0_4 = arith.constant 0 : index
    %c0_5 = arith.constant 0 : index
    %5 = vector.load %arg4[%c0_4, %c0_5] : memref<32x96xf32, #tpu.memory_space<vmem>>, vector<32x96xf32>
    %cst = arith.constant dense<0.000000e+00> : vector<16x96xf32>
    %6 = tpu.matmul %4, %5, %cst {dimension_numbers = #tpu.dot_dimension_numbers<[1], [0], [0], [1], [0, 0, 1, 1], [], []>} : vector<16x32xf32>, vector<32x96xf32>, vector<16x96xf32> -> vector<16x96xf32>
    %7 = arith.addf %3, %6 : vector<16x96xf32>
    %c0_6 = arith.constant 0 : index
    %c0_7 = arith.constant 0 : index
    %8 = vector.load %arg7[%c0_6, %c0_7] : memref<16x96xf32, #tpu.memory_space<vmem>>, vector<16x96xf32>
    tpu.vector_store %arg7[%c0_6, %c0_7], %7 {strides = array<i32>} : memref<16x96xf32, #tpu.memory_space<vmem>>, vector<16x96xf32>,
    %c0_i32_8 = arith.constant 0 : i32
    %9 = arith.cmpi eq, %arg2, %c0_i32_8 : i32
    %10 = arith.extui %9 : i1 to i32
    %c0_i32_9 = arith.constant 0 : i32
    %11 = arith.cmpi ne, %10, %c0_i32_9 : i32
    scf.if %11 {
      %c0_10 = arith.constant 0 : index
      %c0_11 = arith.constant 0 : index
      %12 = vector.load %arg7[%c0_10, %c0_11] : memref<16x96xf32, #tpu.memory_space<vmem>>, vector<16x96xf32>
      %c0_12 = arith.constant 0 : index
      %c0_13 = arith.constant 0 : index
      %13 = vector.load %arg5[%c0_12, %c0_13] : memref<1x96xf32, #tpu.memory_space<vmem>>, vector<1x96xf32>
      %14 = vector.broadcast %13 : vector<1x96xf32> to vector<16x96xf32>
      %15 = arith.addf %12, %14 : vector<16x96xf32>
      %c0_14 = arith.constant 0 : index
      %c0_15 = arith.constant 0 : index
      %16 = vector.load %arg6[%c0_14, %c0_15] : memref<16x96xf32, #tpu.memory_space<vmem>>, vector<16x96xf32>
      tpu.vector_store %arg6[%c0_14, %c0_15], %15 {strides = array<i32>} : memref<16x96xf32, #tpu.memory_space<vmem>>, vector<16x96xf32>,
    } else {
    }
    return
  }
  func.func @transform_0(%arg0: i32, %arg1: i32, %arg2: i32) -> (i32, i32) {
    %c0_i32 = arith.constant 0 : i32
    return %arg0, %arg2 : i32, i32
  }
  func.func @transform_1(%arg0: i32, %arg1: i32, %arg2: i32) -> (i32, i32) {
    %c0_i32 = arith.constant 0 : i32
    return %arg2, %arg1 : i32, i32
  }
  func.func @transform_2(%arg0: i32, %arg1: i32, %arg2: i32) -> (i32, i32) {
    %c0_i32 = arith.constant 0 : i32
    %c0_i32_0 = arith.constant 0 : i32
    return %c0_i32, %arg1 : i32, i32
  }
  func.func @transform_3(%arg0: i32, %arg1: i32, %arg2: i32) -> (i32, i32) {
    %c0_i32 = arith.constant 0 : i32
    return %arg0, %arg1 : i32, i32
  }
}

</mosaic_0001>

<llo_original>
// kernel: tpu_custom_call.1
$region0: #{tpu_custom_call.1}
  #allocation0 [shape = 'u32[]', space=smem, size = 0x4, offset = 0x4, fixed_abs, tag = 'smem constant byte address 0x4 - core index']
  #allocation1 [shape = 'u32[144,128]{1,0:T(1,128)}', space=vmem, size = 0x12000, scoped, tag = 'internal scratch']
  #allocation2 [shape = 'f32[16,96]{1,0:T(8,128)}', space=vmem, size = 0x2000, scoped, tag = 'scratch operand']
  %s0 = inlined_call_operand.hbm [shape: f32[16,32], index: 0, kind: input, shape index: {}]
  %s1 = inlined_call_operand.hbm [shape: f32[32,96], index: 1, kind: input, shape index: {}]
  %s2 = inlined_call_operand.vmem [shape: f32[1,96], index: 2, kind: input, shape index: {}]
  %s3 = inlined_call_operand.hbm [shape: f32[16,96], index: 3, kind: output, shape index: {}]
  %s4 = sld [smem:[#allocation0]]
  $region38: #{tpu_custom_call.1} parent=0
    _
  %s6 = ssub.s32 1, %s4
  %s7 = scalar_select 0, %s6, %s4
  $region1: #{tpu_custom_call.1} parent=0
    #allocation3 [shape = 'u8[8192]{0}', space=vmem, size = 0x2000, scoped, tag = 'input window, operand 0, single buffered']
    #allocation4 [shape = 's32[1]{0}', space=sflag, size = 0x4, scoped, tag = 'scoped memory for tpu_custom_call.1']
    #allocation5 [shape = 's32[1]{0}', space=sflag, size = 0x4, scoped, tag = 'scoped memory for tpu_custom_call.1']
    #allocation6 [shape = 'u8[16384]{0}', space=vmem, size = 0x4000, scoped, tag = 'input window, operand 1, single buffered']
    #allocation7 [shape = 's32[1]{0}', space=sflag, size = 0x4, scoped, tag = 'scoped memory for tpu_custom_call.1']
    #allocation8 [shape = 'u8[8192]{0}', space=vmem, size = 0x2000, scoped, tag = 'output window, operand 0, single buffered']
    %8 = vsyncpa [#allocation4], 0
    %9 = vsyncpa [#allocation7], 0
    %10 = vsyncpa [#allocation5], 0
    // Predicated region
    $region2: #{tpu_custom_call.1} parent=1 // pred_check
      _
    $region3: #{tpu_custom_call.1} parent=1 // pred_check_branch
      %12 = sbr.rel (0) target = $region5
    $region4: #{tpu_custom_call.1} parent=1 // pred_region
      %s14 = ssub.s32 256, 256
      %15 = vsyncadd [#allocation4], %s14
      %s16 = sshll.u32 [#allocation3], 4
      %s17 = int_to_ptr.vmem [resolvable:$true] %s16
      %22 = dma.hbm_to_vmem [thread:$0]  %s0, 256, %s17, [#allocation4], 128, 128, 8
    $region5: #{tpu_custom_call.1} parent=1 // pred_fallthru
      _
    // Predicated region
    $region6: #{tpu_custom_call.1} parent=1 // pred_check
      _
    $region7: #{tpu_custom_call.1} parent=1 // pred_check_branch
      %24 = sbr.rel (0) target = $region9
    $region8: #{tpu_custom_call.1} parent=1 // pred_region
      %s26 = ssub.s32 512, 512
      %27 = vsyncadd [#allocation7], %s26
      %s28 = sshll.u32 [#allocation6], 4
      %s29 = int_to_ptr.vmem [resolvable:$true] %s28
      %34 = dma.hbm_to_vmem [thread:$0]  %s1, 512, %s29, [#allocation7], 128, 128, 8
    $region9: #{tpu_custom_call.1} parent=1 // pred_fallthru
      _
    // Predicated region
    $region10: #{tpu_custom_call.1} parent=1 // pred_check
      _
    $region11: #{tpu_custom_call.1} parent=1 // pred_check_branch
      %36 = sbr.rel (0) target = $region13
    $region12: #{tpu_custom_call.1} parent=1 // pred_region
      _
    $region13: #{tpu_custom_call.1} parent=1 // pred_fallthru
      _
    // Predicated region
    $region14: #{tpu_custom_call.1} parent=1 // pred_check
      _
    $region15: #{tpu_custom_call.1} parent=1 // pred_check_branch
      %38 = sbr.rel (0) target = $region17
    $region16: #{tpu_custom_call.1} parent=1 // pred_region
      %39 = dma.done [#allocation4], 256
    $region17: #{tpu_custom_call.1} parent=1 // pred_fallthru
      _
    // Predicated region
    $region18: #{tpu_custom_call.1} parent=1 // pred_check
      _
    $region19: #{tpu_custom_call.1} parent=1 // pred_check_branch
      %41 = sbr.rel (0) target = $region21
    $region20: #{tpu_custom_call.1} parent=1 // pred_region
      %42 = dma.done [#allocation7], 512
    $region21: #{tpu_custom_call.1} parent=1 // pred_fallthru
      _
    %p43 = scmp.eq.s32.totalorder 0, 0
    // Predicated region
    $region22: #{tpu_custom_call.1} parent=1 // pred_check
      %p44 = pneg %p43
    $region23: #{tpu_custom_call.1} parent=1 // pred_check_branch
      %46 = sbr.rel (%p44) target = $region25
    $region24: #{tpu_custom_call.1} parent=1 // pred_region
      %vm47 = vcmask 785408
      %48 = vst.msk [vmem:[#allocation2] sm:$0xff] %vm47, 0.0
      %49 = vst.msk [vmem:[#allocation2 + $0x8] sm:$0xff] %vm47, 0.0
    $region25: #{tpu_custom_call.1} parent=1 // pred_fallthru
      _
    %v50 = vld [vmem:[#allocation2] sm:$0xff]
    %v51 = vld [vmem:[#allocation2 + $0x8] sm:$0xff]
    %v52 = vld [vmem:[#allocation3] sm:$0xff]
    %v53 = vld [vmem:[#allocation3 + $0x8] sm:$0xff]
    %v54 = vld [vmem:[#allocation6] sm:$0xff]
    %v55 = vld [vmem:[#allocation6 + $0x8] sm:$0xff]
    %v56 = vld [vmem:[#allocation6 + $0x10] sm:$0xff]
    %v57 = vld [vmem:[#allocation6 + $0x18] sm:$0xff]
    %vm58 = vcmask 261120
    %v60 = vsel %vm58, %v52, 0
    %v63 = vsel %vm58, %v53, 0
    %65 = vmatprep.subr.mxu0 0.0
    %66 = vmatpush1.msra.mxu0 %v54
    %67 = vmatprep.subr.mxu0 0.0
    %68 = vmatpush1.msra.mxu0 %v55
    %69 = vmatprep.subr.mxu0 0.0
    %70 = vmatpush1.msra.mxu0 %v56
    %71 = vmatprep.subr.mxu0 0.0
    %72 = vmatpush1.msra.mxu0 %v57
    %73 = vmatprep.subr.mxu0 0.0
    %74 = vmatpush1.msra.mxu0 0.0
    %75 = vmatprep.subr.mxu0 0.0
    %76 = vmatpush1.msra.mxu0 0.0
    %77 = vmatprep.subr.mxu0 0.0
    %78 = vmatpush1.msra.mxu0 0.0
    %79 = vmatprep.subr.mxu0 0.0
    %80 = vmatpush1.msra.mxu0 0.0
    %81 = vmatprep.subr.mxu0 0.0
    %82 = vmatpush1.msra.mxu0 0.0
    %83 = vmatprep.subr.mxu0 0.0
    %84 = vmatpush1.msra.mxu0 0.0
    %85 = vmatprep.subr.mxu0 0.0
    %86 = vmatpush1.msra.mxu0 0.0
    %87 = vmatprep.subr.mxu0 0.0
    %88 = vmatpush1.msra.mxu0 0.0
    %89 = vmatprep.subr.mxu0 0.0
    %90 = vmatpush1.msra.mxu0 0.0
    %91 = vmatprep.subr.mxu0 0.0
    %92 = vmatpush1.msra.mxu0 0.0
    %93 = vmatprep.subr.mxu0 0.0
    %94 = vmatpush1.msra.mxu0 0.0
    %95 = vmatprep.subr.mxu0 0.0
    %96 = vmatpush1.msra.mxu0 0.0
    %97 = vmatprep.subr.mxu0 0.0
    %98 = vmatpush1.msra.mxu0 0.0
    %99 = vmatprep.subr.mxu0 0.0
    %100 = vmatpush1.msra.mxu0 0.0
    %101 = vmatprep.subr.mxu0 0.0
    %102 = vmatpush1.msra.mxu0 0.0
    %103 = vmatprep.subr.mxu0 0.0
    %104 = vmatpush1.msra.mxu0 0.0
    %105 = vmatprep.subr.mxu0 0.0
    %106 = vmatpush1.msra.mxu0 0.0
    %107 = vmatprep.subr.mxu0 0.0
    %108 = vmatpush1.msra.mxu0 0.0
    %109 = vmatprep.subr.mxu0 0.0
    %110 = vmatpush1.msra.mxu0 0.0
    %111 = vmatprep.subr.mxu0 0.0
    %112 = vmatpush1.msra.mxu0 0.0
    %113 = vmatprep.subr.mxu0 0.0
    %114 = vmatpush1.msra.mxu0 0.0
    %115 = vmatprep.subr.mxu0 0.0
    %116 = vmatpush1.msra.mxu0 0.0
    %117 = vmatprep.subr.mxu0 0.0
    %118 = vmatpush1.msra.mxu0 0.0
    %119 = vmatprep.subr.mxu0 0.0
    %120 = vmatpush1.msra.mxu0 0.0
    %121 = vmatprep.subr.mxu0 0.0
    %122 = vmatpush1.msra.mxu0 0.0
    %123 = vmatprep.subr.mxu0 0.0
    %124 = vmatpush1.msra.mxu0 0.0
    %125 = vmatprep.subr.mxu0 0.0
    %126 = vmatpush1.msra.mxu0 0.0
    %127 = vmatprep.subr.mxu0 0.0
    %128 = vmatpush1.msra.mxu0 0.0
    %129 = vmatprep.mubr.f32.mxu0 0.0
    %130 = vmatmul.mubr.f32.gmra.mrb[0].mxu0 %v60
    %v131 = vpop.f32.mrb[0].mxu0
    %v132 = vadd.f32 0.0, %v131
    %v133 = vpop.f32.mrb[0].mxu0
    %134 = vmatprep.mubr.f32.mxu0 0.0
    %135 = vmatmul.mubr.f32.gmra.mrb[0].mxu0 %v63
    %v136 = vpop.f32.mrb[0].mxu0
    %v137 = vadd.f32 0.0, %v136
    %v138 = vpop.f32.mrb[0].mxu0
    %139 = vdwg.mxu0
    %v140 = vadd.f32 %v50, %v132
    %v141 = vadd.f32 %v51, %v137
    %vm142 = vcmask 785408
    %143 = vst.msk [vmem:[#allocation2] sm:$0xff] %vm142, %v140
    %144 = vst.msk [vmem:[#allocation2 + $0x8] sm:$0xff] %vm142, %v141
    // Predicated region
    $region26: #{tpu_custom_call.1} parent=1 // pred_check
      %p145 = pneg %p43
    $region27: #{tpu_custom_call.1} parent=1 // pred_check_branch
      %147 = sbr.rel (%p145) target = $region29
    $region28: #{tpu_custom_call.1} parent=1 // pred_region
      %v148 = vld [vmem:[#allocation2] sm:$0xff]
      %v149 = vld [vmem:[#allocation2 + $0x8] sm:$0xff]
      %v150 = vld [vmem:[%s2] sm:$0x1]
      %v152 = vlaneseq
      %v153 = vshrl.u32 %v152, 7
      %v154 = vsub.s32 0, %v153
      %v155 = vrot.slane %v150, %v154
      %v157 = vadd.f32 %v148, %v155
      %v158 = vadd.f32 %v149, %v155
      %159 = vst.msk [vmem:[#allocation8] sm:$0xff] %vm142, %v157
      %160 = vst.msk [vmem:[#allocation8 + $0x8] sm:$0xff] %vm142, %v158
    $region29: #{tpu_custom_call.1} parent=1 // pred_fallthru
      _
    // Predicated region
    $region30: #{tpu_custom_call.1} parent=1 // pred_check
      _
    $region31: #{tpu_custom_call.1} parent=1 // pred_check_branch
      %162 = sbr.rel (0) target = $region33
    $region32: #{tpu_custom_call.1} parent=1 // pred_region
      %s164 = ssub.s32 256, 256
      %165 = vsyncadd [#allocation5], %s164
      %s166 = sshll.u32 [#allocation8], 4
      %s167 = int_to_ptr.vmem [resolvable:$true] %s166
      %172 = dma.vmem_to_hbm [thread:$0]  %s167, 256, %s3, [#allocation5], 128, 128, 8
    $region33: #{tpu_custom_call.1} parent=1 // pred_fallthru
      _
    // Predicated region
    $region34: #{tpu_custom_call.1} parent=1 // pred_check
      _
    $region35: #{tpu_custom_call.1} parent=1 // pred_check_branch
      %174 = sbr.rel (0) target = $region37
    $region36: #{tpu_custom_call.1} parent=1 // pred_region
      %175 = dma.done [#allocation5], 256
    $region37: #{tpu_custom_call.1} parent=1 // pred_fallthru
      _
    %176 = vsyncpa [#allocation4], 1
    %177 = vsyncpa [#allocation7], 1
    %178 = vsyncpa [#allocation5], 1

</llo_original>
